<compile_context>
chip_gen: v6e
topology: v6e:2x2x1
jax: 0.10.0
libtpu: 0.0.40
codegen_flags: <defaults>
</compile_context>

<pallas_src>
import functools
import math

import jax
import jax.numpy as jnp
from jax.experimental import pallas as pl
from jax.experimental.pallas import tpu as pltpu


def _round_up(x, m):
    return (x + m - 1) // m * m


def _convblock_kernel(x_ref, w_ref, b_ref, o_ref, *, H, W, nb):
    """One grid step = `nb` batch items, full spatial extent.

    x_ref: (nb, Cin_pad, HW)      unpadded input, spatial flattened, f32
    w_ref: (Cout_pad, 9*Cin_pad)  tap-major (kh, kw, cin) weights (bf16/f32)
    b_ref: (Cout_pad, 1)          f32
    o_ref: (nb, Cout_pad, HW)     f32
    """
    HW = H * W
    cin_pad = x_ref.shape[1]
    wv = w_ref[...]                       # VMEM-resident weights
    cdtype = wv.dtype                     # MXU operand dtype (bf16 by default)

    # ---- Edge masks: computed ONCE, shared by all 9 taps and all nb items.
    pos = jax.lax.broadcasted_iota(jnp.int32, (cin_pad, HW), 1)
    if (W & (W - 1)) == 0:                # power-of-two width: shift/AND, no div/mod
        col = pos & (W - 1)
        row = pos >> int(math.log2(W))
    else:
        col = pos % W
        row = pos // W
    row_ok = {-1: row != 0, 0: None, 1: row != H - 1}
    col_ok = {-1: col != 0, 0: None, 1: col != W - 1}
    tap_ok = {}
    for dh in (-1, 0, 1):
        for dw in (-1, 0, 1):
            rm, cm = row_ok[dh], col_ok[dw]
            tap_ok[(dh, dw)] = rm if cm is None else (cm if rm is None else rm & cm)

    # ---- Build X = (9*Cin_pad, nb*HW): per item, nine lane-rolled + masked
    # taps stacked along K (8-aligned Cin_pad segments), then lane-concat
    # across items at HW boundaries (multiple of 128 for aligned shapes).
    items = []
    for n in range(nb):
        xn = x_ref[n]                                      # (Cin_pad, HW)
        taps = []
        for dh in (-1, 0, 1):
            for dw in (-1, 0, 1):
                shift = (-(dh * W + dw)) % HW              # static lane rotation
                xt = xn if shift == 0 else pltpu.roll(xn, shift, axis=1)
                ok = tap_ok[(dh, dw)]
                if ok is not None:
                    xt = jnp.where(ok, xt, 0.0)            # kill wrap-around reads
                taps.append(xt)
        items.append(jnp.concatenate(taps, axis=0).astype(cdtype))  # (9*Cin_pad, HW)
    xk = items[0] if nb == 1 else jnp.concatenate(items, axis=1)    # (K, nb*HW)

    # ---- One MXU matmul (f32 accumulate); bias + ReLU on the VPU.
    acc = jnp.dot(wv, xk, preferred_element_type=jnp.float32)       # (Cout_pad, nb*HW)
    acc = jnp.maximum(acc + b_ref[...], 0.0)

    # ---- Lane-aligned, full-width stores (one per item).
    for n in range(nb):
        o_ref[n] = acc[:, n * HW:(n + 1) * HW].astype(o_ref.dtype)


def conv_block_forward(x_nchw, weight, bias, *, use_bf16=True, target_lanes=1024):
    """ConvBlock forward: ReLU(Conv2d(x, weight, bias, kernel=3, padding=1)).

    x_nchw:  (N, Cin, H, W) float32
    weight:  (Cout, Cin, 3, 3) float32   (PyTorch conv weight layout)
    bias:    (Cout,) float32
    returns: (N, Cout, H, W) float32
    """
    N, Cin, H, W = x_nchw.shape
    Cout = weight.shape[0]
    HW = H * W

    cin_pad = _round_up(Cin, 8)
    cout_pad = _round_up(Cout, 8)

    # Data path: pure reshape. The only pad is an 8-sublane channel pad, a
    # no-op whenever Cin % 8 == 0, and required so the in-kernel 9-tap K
    # concat stays (8,128)-tile aligned (replaces the old two spatial pads).
    xf = x_nchw.reshape(N, Cin, HW)
    if cin_pad != Cin:
        xf = jnp.pad(xf, ((0, 0), (0, cin_pad - Cin), (0, 0)))

    wp = weight
    if cin_pad != Cin or cout_pad != Cout:
        wp = jnp.pad(wp, ((0, cout_pad - Cout), (0, cin_pad - Cin), (0, 0), (0, 0)))
    # (Cout_pad, Cin_pad, 3, 3) -> (Cout_pad, kh, kw, cin) -> (Cout_pad, 9*Cin_pad)
    # K order matches the in-kernel tap-major [tap, cin] stacking.
    w2 = jnp.transpose(wp, (0, 2, 3, 1)).reshape(cout_pad, 9 * cin_pad)
    w2 = w2.astype(jnp.bfloat16 if use_bf16 else jnp.float32)   # pre-cast once
    b2 = jnp.pad(bias, (0, cout_pad - Cout)).reshape(cout_pad, 1).astype(jnp.float32)

    # Batch folding: target >= `target_lanes` lanes per MXU matmul / grid step,
    # but keep >= 2 (parallel) grid steps when N allows so both v7x TensorCores
    # get work; larger N amortises per-step overhead on the v5e/v6e loop too.
    nb = max(1, min(N, target_lanes // max(HW, 1)))
    while nb > 1 and N // nb < 2:
        nb -= 1
    while N % nb != 0:
        nb -= 1
    grid_n = N // nb

    kernel = functools.partial(_convblock_kernel, H=H, W=W, nb=nb)

    flops = 2 * N * cout_pad * 9 * cin_pad * HW
    bytes_accessed = (xf.size * xf.dtype.itemsize
                      + w2.size * w2.dtype.itemsize
                      + b2.size * b2.dtype.itemsize
                      + N * cout_pad * HW * 4)

    # TODO(synk): for large real H*W / channel counts, add a spatial-tile grid
    # axis (512-2048-lane tiles, multiples of W, with a one-row halo) and size
    # blocks + the 9x tap slab against per-chip scoped VMEM (v7x 64 MiB total,
    # v5e 16 MiB default scoped -> set vmem_limit_bytes with headroom),
    # splitting K into kh-groups accumulated in a f32 scratch if the slab wins.
    out = pl.pallas_call(
        kernel,
        out_shape=jax.ShapeDtypeStruct((N, cout_pad, HW), jnp.float32),
        grid_spec=pltpu.PrefetchScalarGridSpec(
            num_scalar_prefetch=0,
            grid=(grid_n,),
            in_specs=[
                pl.BlockSpec((nb, cin_pad, HW), lambda i: (i, 0, 0)),
                pl.BlockSpec((cout_pad, 9 * cin_pad), lambda i: (0, 0)),  # resident
                pl.BlockSpec((cout_pad, 1), lambda i: (0, 0)),            # resident
            ],
            out_specs=pl.BlockSpec((nb, cout_pad, HW), lambda i: (i, 0, 0)),
        ),
        compiler_params=pltpu.CompilerParams(
            dimension_semantics=("parallel",),   # shard batch steps across TCs
        ),
        cost_estimate=pl.CostEstimate(
            flops=flops, transcendentals=0, bytes_accessed=bytes_accessed),
    )(xf, w2, b2)

    if cout_pad != Cout:
        out = out[:, :Cout, :]
    return out.reshape(N, Cout, H, W)


def _reference(x, weight, bias):
    Cout = weight.shape[0]
    ref = jax.lax.conv_general_dilated(
        x, weight, window_strides=(1, 1), padding="SAME",
        dimension_numbers=("NCHW", "OIHW", "NCHW"),
    ) + bias.reshape(1, Cout, 1, 1)
    return jnp.maximum(ref, 0.0)


if __name__ == "__main__":
    # Shapes consistent with ConvBlock(in_channels=4, out_channels=8).
    N, Cin, H, W = 2, 4, 16, 16
    Cout = 8

    key = jax.random.PRNGKey(0)
    kx, kw, kb, kx2 = jax.random.split(key, 4)
    x = jax.random.normal(kx, (N, Cin, H, W), dtype=jnp.float32)
    weight = jax.random.normal(kw, (Cout, Cin, 3, 3), dtype=jnp.float32) * 0.1
    bias = jax.random.normal(kb, (Cout,), dtype=jnp.float32) * 0.1

    out = jax.block_until_ready(conv_block_forward(x, weight, bias))
    ref = _reference(x, weight, bias)
    assert out.shape == (N, Cout, H, W)
    # bf16 MXU operands (f32 accumulation) -> looser tolerance than pure f32.
    assert jnp.allclose(out, ref, atol=5e-2, rtol=5e-2), (
        "max abs err %e" % float(jnp.max(jnp.abs(out - ref))))

    # Second check exercises the batch-folding path (nb > 1, 2 parallel steps).
    x2 = jax.random.normal(kx2, (8, Cin, H, W), dtype=jnp.float32)
    out2 = jax.block_until_ready(conv_block_forward(x2, weight, bias))
    ref2 = _reference(x2, weight, bias)
    assert jnp.allclose(out2, ref2, atol=5e-2, rtol=5e-2), (
        "max abs err %e" % float(jnp.max(jnp.abs(out2 - ref2))))

    print("KERNEL_OK")
</pallas_src>

<mosaic_0001>
module attributes {stable_mosaic.version = 11 : i64} {
  func.func @_convblock_kernel(%arg0: i32, %arg1: memref<1x8x256xf32, #tpu.memory_space<vmem>>, %arg2: memref<8x72xbf16, #tpu.memory_space<vmem>>, %arg3: memref<8x1xf32, #tpu.memory_space<vmem>>, %arg4: memref<1x8x256xf32, #tpu.memory_space<vmem>>) attributes {dimension_semantics = [#tpu.dimension_semantics<parallel>], iteration_bounds = array<i64: 2>, scalar_prefetch = 0 : i64, scratch_operands = 0 : i64, tpu.core_type = #tpu.core_type<tc>, window_params = [{transform_indices = @transform_0, window_bounds = array<i64: 1, 8, 256>}, {pipeline_mode = #tpu.pipeline_mode<synchronous>, transform_indices = @transform_1, window_bounds = array<i64: 8, 72>}, {pipeline_mode = #tpu.pipeline_mode<synchronous>, transform_indices = @transform_2, window_bounds = array<i64: 8, 1>}, {transform_indices = @transform_3, window_bounds = array<i64: 1, 8, 256>}]} {
    %c0 = arith.constant 0 : index
    %c0_0 = arith.constant 0 : index
    %0 = vector.load %arg2[%c0, %c0_0] : memref<8x72xbf16, #tpu.memory_space<vmem>>, vector<8x72xbf16>
    %1 = tpu.iota {dimensions = array<i32: 1>} : vector<8x256xi32>
    %c15_i32 = arith.constant 15 : i32
    %2 = vector.broadcast %c15_i32 : i32 to vector<8x256xi32>
    %3 = arith.andi %1, %2 : vector<8x256xi32>
    %c4_i32 = arith.constant 4 : i32
    %4 = vector.broadcast %c4_i32 : i32 to vector<8x256xi32>
    %5 = arith.shrsi %1, %4 : vector<8x256xi32>
    %c0_i32 = arith.constant 0 : i32
    %6 = vector.broadcast %c0_i32 : i32 to vector<8x256xi32>
    %7 = arith.cmpi ne, %5, %6 : vector<8x256xi32>
    %c15_i32_1 = arith.constant 15 : i32
    %8 = vector.broadcast %c15_i32_1 : i32 to vector<8x256xi32>
    %9 = arith.cmpi ne, %5, %8 : vector<8x256xi32>
    %c0_i32_2 = arith.constant 0 : i32
    %10 = vector.broadcast %c0_i32_2 : i32 to vector<8x256xi32>
    %11 = arith.cmpi ne, %3, %10 : vector<8x256xi32>
    %c15_i32_3 = arith.constant 15 : i32
    %12 = vector.broadcast %c15_i32_3 : i32 to vector<8x256xi32>
    %13 = arith.cmpi ne, %3, %12 : vector<8x256xi32>
    %14 = arith.andi %7, %11 : vector<8x256xi1>
    %15 = arith.andi %7, %13 : vector<8x256xi1>
    %16 = arith.andi %9, %11 : vector<8x256xi1>
    %17 = arith.andi %9, %13 : vector<8x256xi1>
    %c0_4 = arith.constant 0 : index
    %c0_5 = arith.constant 0 : index
    %c0_6 = arith.constant 0 : index
    %18 = vector.load %arg1[%c0_4, %c0_5, %c0_6] : memref<1x8x256xf32, #tpu.memory_space<vmem>>, vector<1x8x256xf32>
    %19 = vector.shape_cast %18 : vector<1x8x256xf32> to vector<8x256xf32>
    %c17_i32 = arith.constant 17 : i32
    %20 = tpu.dynamic_rotate %19 by %c17_i32 dim 1 : vector<8x256xf32>, i32 -> vector<8x256xf32>
    %cst = arith.constant 0.000000e+00 : f32
    %21 = vector.broadcast %cst : f32 to vector<8x256xf32>
    %22 = arith.select %14, %20, %21 : vector<8x256xi1>, vector<8x256xf32>
    %c16_i32 = arith.constant 16 : i32
    %23 = tpu.dynamic_rotate %19 by %c16_i32 dim 1 : vector<8x256xf32>, i32 -> vector<8x256xf32>
    %cst_7 = arith.constant 0.000000e+00 : f32
    %24 = vector.broadcast %cst_7 : f32 to vector<8x256xf32>
    %25 = arith.select %7, %23, %24 : vector<8x256xi1>, vector<8x256xf32>
    %c15_i32_8 = arith.constant 15 : i32
    %26 = tpu.dynamic_rotate %19 by %c15_i32_8 dim 1 : vector<8x256xf32>, i32 -> vector<8x256xf32>
    %cst_9 = arith.constant 0.000000e+00 : f32
    %27 = vector.broadcast %cst_9 : f32 to vector<8x256xf32>
    %28 = arith.select %15, %26, %27 : vector<8x256xi1>, vector<8x256xf32>
    %c1_i32 = arith.constant 1 : i32
    %29 = tpu.dynamic_rotate %19 by %c1_i32 dim 1 : vector<8x256xf32>, i32 -> vector<8x256xf32>
    %cst_10 = arith.constant 0.000000e+00 : f32
    %30 = vector.broadcast %cst_10 : f32 to vector<8x256xf32>
    %31 = arith.select %11, %29, %30 : vector<8x256xi1>, vector<8x256xf32>
    %c255_i32 = arith.constant 255 : i32
    %32 = tpu.dynamic_rotate %19 by %c255_i32 dim 1 : vector<8x256xf32>, i32 -> vector<8x256xf32>
    %cst_11 = arith.constant 0.000000e+00 : f32
    %33 = vector.broadcast %cst_11 : f32 to vector<8x256xf32>
    %34 = arith.select %13, %32, %33 : vector<8x256xi1>, vector<8x256xf32>
    %c241_i32 = arith.constant 241 : i32
    %35 = tpu.dynamic_rotate %19 by %c241_i32 dim 1 : vector<8x256xf32>, i32 -> vector<8x256xf32>
    %cst_12 = arith.constant 0.000000e+00 : f32
    %36 = vector.broadcast %cst_12 : f32 to vector<8x256xf32>
    %37 = arith.select %16, %35, %36 : vector<8x256xi1>, vector<8x256xf32>
    %c240_i32 = arith.constant 240 : i32
    %38 = tpu.dynamic_rotate %19 by %c240_i32 dim 1 : vector<8x256xf32>, i32 -> vector<8x256xf32>
    %cst_13 = arith.constant 0.000000e+00 : f32
    %39 = vector.broadcast %cst_13 : f32 to vector<8x256xf32>
    %40 = arith.select %9, %38, %39 : vector<8x256xi1>, vector<8x256xf32>
    %c239_i32 = arith.constant 239 : i32
    %41 = tpu.dynamic_rotate %19 by %c239_i32 dim 1 : vector<8x256xf32>, i32 -> vector<8x256xf32>
    %cst_14 = arith.constant 0.000000e+00 : f32
    %42 = vector.broadcast %cst_14 : f32 to vector<8x256xf32>
    %43 = arith.select %17, %41, %42 : vector<8x256xi1>, vector<8x256xf32>
    %44 = tpu.concatenate %22, %25, %28, %31, %19, %34, %37, %40, %43 in 0 : vector<8x256xf32>, vector<8x256xf32>, vector<8x256xf32>, vector<8x256xf32>, vector<8x256xf32>, vector<8x256xf32>, vector<8x256xf32>, vector<8x256xf32>, vector<8x256xf32> -> vector<72x256xf32>
    %45 = arith.truncf %44 : vector<72x256xf32> to vector<72x256xbf16>
    %cst_15 = arith.constant dense<0.000000e+00> : vector<8x256xf32>
    %46 = tpu.matmul %0, %45, %cst_15 {dimension_numbers = #tpu.dot_dimension_numbers<[1], [0], [0], [1], [0, 0, 1, 1], [], []>} : vector<8x72xbf16>, vector<72x256xbf16>, vector<8x256xf32> -> vector<8x256xf32>
    %c0_16 = arith.constant 0 : index
    %c0_17 = arith.constant 0 : index
    %47 = vector.load %arg3[%c0_16, %c0_17] : memref<8x1xf32, #tpu.memory_space<vmem>>, vector<8x1xf32>
    %48 = vector.broadcast %47 : vector<8x1xf32> to vector<8x256xf32>
    %49 = arith.addf %46, %48 : vector<8x256xf32>
    %cst_18 = arith.constant 0.000000e+00 : f32
    %50 = vector.broadcast %cst_18 : f32 to vector<8x256xf32>
    %51 = arith.maximumf %49, %50 : vector<8x256xf32>
    %c0_19 = arith.constant 0 : index
    %c0_20 = arith.constant 0 : index
    %c0_21 = arith.constant 0 : index
    %52 = vector.load %arg4[%c0_19, %c0_20, %c0_21] : memref<1x8x256xf32, #tpu.memory_space<vmem>>, vector<1x8x256xf32>
    %53 = vector.shape_cast %52 : vector<1x8x256xf32> to vector<8x256xf32>
    %54 = vector.shape_cast %51 : vector<8x256xf32> to vector<1x8x256xf32>
    tpu.vector_store %arg4[%c0_19, %c0_20, %c0_21], %54 {strides = array<i32>} : memref<1x8x256xf32, #tpu.memory_space<vmem>>, vector<1x8x256xf32>,
    return
  }
  func.func @transform_0(%arg0: i32) -> (i32, i32, i32) {
    %c0_i32 = arith.constant 0 : i32
    %c0_i32_0 = arith.constant 0 : i32
    %c0_i32_1 = arith.constant 0 : i32
    return %arg0, %c0_i32, %c0_i32_0 : i32, i32, i32
  }
  func.func @transform_1(%arg0: i32) -> (i32, i32) {
    %c0_i32 = arith.constant 0 : i32
    %c0_i32_0 = arith.constant 0 : i32
    %c0_i32_1 = arith.constant 0 : i32
    return %c0_i32, %c0_i32_0 : i32, i32
  }
  func.func @transform_2(%arg0: i32) -> (i32, i32) {
    %c0_i32 = arith.constant 0 : i32
    %c0_i32_0 = arith.constant 0 : i32
    %c0_i32_1 = arith.constant 0 : i32
    return %c0_i32, %c0_i32_0 : i32, i32
  }
  func.func @transform_3(%arg0: i32) -> (i32, i32, i32) {
    %c0_i32 = arith.constant 0 : i32
    %c0_i32_0 = arith.constant 0 : i32
    %c0_i32_1 = arith.constant 0 : i32
    return %arg0, %c0_i32, %c0_i32_0 : i32, i32, i32
  }
}

</mosaic_0001>

<llo_original>
// kernel: tpu_custom_call.1
$region0: #{tpu_custom_call.1}
  #allocation0 [shape = 'u32[]', space=smem, size = 0x4, offset = 0x4, fixed_abs, tag = 'smem constant byte address 0x4 - core index']
  #allocation1 [shape = 'u32[144,128]{1,0:T(1,128)}', space=vmem, size = 0x12000, scoped, tag = 'internal scratch']
  %s0 = inlined_call_operand.hbm [shape: f32[2,8,256], index: 0, kind: input, shape index: {}]
  %s1 = inlined_call_operand.vmem [shape: bf16[8,72], index: 1, kind: input, shape index: {}]
  %s2 = inlined_call_operand.vmem [shape: f32[8,1], index: 2, kind: input, shape index: {}]
  %s3 = inlined_call_operand.hbm [shape: f32[2,8,256], index: 3, kind: output, shape index: {}]
  %s4 = sld [smem:[#allocation0]]
  $region49: #{tpu_custom_call.1} parent=0
    _
  %s6 = ssub.s32 1, %s4
  %s7 = scalar_select 0, %s6, %s4
  $region1: #{tpu_custom_call.1} parent=0
    #allocation2 [shape = 'u8[16384]{0}', space=vmem, size = 0x4000, scoped, tag = 'input window, operand 0']
    #allocation3 [shape = 's32[2]{0}', space=sflag, size = 0x8, scoped, tag = 'scoped memory for tpu_custom_call.1']
    #allocation4 [shape = 's32[2]{0}', space=sflag, size = 0x8, scoped, tag = 'scoped memory for tpu_custom_call.1']
    #allocation5 [shape = 'u8[16384]{0}', space=vmem, size = 0x4000, scoped, tag = 'output window, operand 0']
    %8 = vsyncpa [#allocation3], 0
    %s9 = scalar_lea.sflag [#allocation3], 1
    %10 = vsyncpa %s9, 0
    %11 = vsyncpa [#allocation4], 0
    %s12 = scalar_lea.sflag [#allocation4], 1
    %13 = vsyncpa %s12, 0
    loop: start=0, step=1, limit=4
    $region2: #{tpu_custom_call.1} parent=1 // loop_pre_header
      _
    $region3: #{tpu_custom_call.1} parent=1 // loop_header
      %s15 = sphi 0, %s19
      %p16 = scmp.ge.s32.totalorder %s15, 4
      %s25 = sphi 0, %s27
      %s28 = sphi 0, %s25
      %s29 = sphi 0, %s28
      %s45 = sphi 0, %s29
      %s49 = sphi 0, %s49
      %s51 = sphi 0, %s49
      %s52 = sphi 0, %s51
      %s66 = sphi 0, %s52
      %s70 = sphi 0, %s70
      %s72 = sphi 0, %s70
      %s73 = sphi 0, %s72
      %s87 = sphi 0, %s73
      %s93 = sphi 0, %s95
      %s96 = sphi 0, %s93
      %s97 = sphi 0, %s96
      %s113 = sphi 0, %s97
    $region4: #{tpu_custom_call.1} parent=1 // loop_header_branch
      %18 = sbr.rel (%p16) target = $region8
    $region5: #{tpu_custom_call.1} parent=1 // loop_body
      %s20 = ssub.s32 %s15, 1
      %s21 = ssub.s32 %s15, 2
      %s22 = sadd.s32 %s15, 1
      %s23 = ssub.s32 %s15, %s22
      %p24 = scmp.eq.s32.totalorder %s23, 0
      %s26 = sadd.s32 %s25, 1
      %s27 = scalar_select %p24, %s25, %s26
      %p30 = pneg %p24
      %p31 = scmp.eq.s32.totalorder %s15, 1
      %p32 = por %p30, %p31
      %p33 = scmp.ne.s32.totalorder %s25, %s28
      %p34 = scmp.eq.s32.totalorder %s15, 0
      %p35 = por %p33, %p34
      %p36 = scmp.ne.s32.totalorder %s25, %s28
      %p37 = scmp.eq.s32.totalorder %s20, 1
      %p38 = por %p36, %p37
      %p39 = scmp.ne.s32.totalorder %s28, %s29
      %p40 = scmp.eq.s32.totalorder %s20, 0
      %p41 = por %p39, %p40
      %p42 = scmp.ne.s32.totalorder %s28, %s29
      %p43 = scmp.eq.s32.totalorder %s21, 1
      %p44 = por %p42, %p43
      %p46 = scmp.ne.s32.totalorder %s29, %s45
      %p47 = scmp.eq.s32.totalorder %s21, 0
      %p48 = por %p46, %p47
      %s50 = sadd.s32 %s49, 1
      %p53 = scmp.eq.s32.totalorder %s15, 1
      %p54 = scmp.ne.s32.totalorder %s49, %s51
      %p55 = scmp.eq.s32.totalorder %s15, 0
      %p56 = por %p54, %p55
      %p57 = scmp.ne.s32.totalorder %s49, %s51
      %p58 = scmp.eq.s32.totalorder %s20, 1
      %p59 = por %p57, %p58
      %p60 = scmp.ne.s32.totalorder %s51, %s52
      %p61 = scmp.eq.s32.totalorder %s20, 0
      %p62 = por %p60, %p61
      %p63 = scmp.ne.s32.totalorder %s51, %s52
      %p64 = scmp.eq.s32.totalorder %s21, 1
      %p65 = por %p63, %p64
      %p67 = scmp.ne.s32.totalorder %s52, %s66
      %p68 = scmp.eq.s32.totalorder %s21, 0
      %p69 = por %p67, %p68
      %s71 = sadd.s32 %s70, 1
      %p74 = scmp.eq.s32.totalorder %s15, 1
      %p75 = scmp.ne.s32.totalorder %s70, %s72
      %p76 = scmp.eq.s32.totalorder %s15, 0
      %p77 = por %p75, %p76
      %p78 = scmp.ne.s32.totalorder %s70, %s72
      %p79 = scmp.eq.s32.totalorder %s20, 1
      %p80 = por %p78, %p79
      %p81 = scmp.ne.s32.totalorder %s72, %s73
      %p82 = scmp.eq.s32.totalorder %s20, 0
      %p83 = por %p81, %p82
      %p84 = scmp.ne.s32.totalorder %s72, %s73
      %p85 = scmp.eq.s32.totalorder %s21, 1
      %p86 = por %p84, %p85
      %p88 = scmp.ne.s32.totalorder %s73, %s87
      %p89 = scmp.eq.s32.totalorder %s21, 0
      %p90 = por %p88, %p89
      %s91 = ssub.s32 %s15, %s22
      %p92 = scmp.eq.s32.totalorder %s91, 0
      %s94 = sadd.s32 %s93, 1
      %s95 = scalar_select %p92, %s93, %s94
      %p98 = pneg %p92
      %p99 = scmp.eq.s32.totalorder %s15, 1
      %p100 = por %p98, %p99
      %p101 = scmp.ne.s32.totalorder %s93, %s96
      %p102 = scmp.eq.s32.totalorder %s15, 0
      %p103 = por %p101, %p102
      %p104 = scmp.ne.s32.totalorder %s93, %s96
      %p105 = scmp.eq.s32.totalorder %s20, 1
      %p106 = por %p104, %p105
      %p107 = scmp.ne.s32.totalorder %s96, %s97
      %p108 = scmp.eq.s32.totalorder %s20, 0
      %p109 = por %p107, %p108
      %p110 = scmp.ne.s32.totalorder %s96, %s97
      %p111 = scmp.eq.s32.totalorder %s21, 1
      %p112 = por %p110, %p111
      %p114 = scmp.ne.s32.totalorder %s97, %s113
      %p115 = scmp.eq.s32.totalorder %s21, 0
      %p116 = por %p114, %p115
      %p117 = scmp.le.s32.totalorder 1, %s15
      %p118 = scmp.lt.s32.totalorder %s15, 3
      %p119 = pnand %p117, %p118
      %p120 = pneg %p119
      // Predicated region
      $region9: #{tpu_custom_call.1} parent=5 // pred_check
        _
      $region10: #{tpu_custom_call.1} parent=5 // pred_check_branch
        %122 = sbr.rel (%p119) target = $region12
      $region11: #{tpu_custom_call.1} parent=5 // pred_region
        %s123 = ssub.s32 %s15, 1
        // Predicated region
        $region13: #{tpu_custom_call.1} parent=11 // pred_check
          %p124 = pneg %p62
        $region14: #{tpu_custom_call.1} parent=11 // pred_check_branch
          %126 = sbr.rel (%p124) target = $region16
        $region15: #{tpu_custom_call.1} parent=11 // pred_region
          _
        $region16: #{tpu_custom_call.1} parent=11 // pred_fallthru
          _
        // Predicated region
        $region17: #{tpu_custom_call.1} parent=11 // pred_check
          %p127 = pneg %p83
        $region18: #{tpu_custom_call.1} parent=11 // pred_check_branch
          %129 = sbr.rel (%p127) target = $region20
        $region19: #{tpu_custom_call.1} parent=11 // pred_region
          _
        $region20: #{tpu_custom_call.1} parent=11 // pred_fallthru
          _
      $region12: #{tpu_custom_call.1} parent=5 // pred_fallthru
        _
      %p130 = scmp.lt.s32.totalorder %s15, 2
      // Predicated region
      $region21: #{tpu_custom_call.1} parent=5 // pred_check
        %p131 = pneg %p130
      $region22: #{tpu_custom_call.1} parent=5 // pred_check_branch
        %133 = sbr.rel (%p131) target = $region24
      $region23: #{tpu_custom_call.1} parent=5 // pred_region
        // Predicated region
        $region25: #{tpu_custom_call.1} parent=23 // pred_check
          %p134 = pneg %p35
        $region26: #{tpu_custom_call.1} parent=23 // pred_check_branch
          %136 = sbr.rel (%p134) target = $region28
        $region27: #{tpu_custom_call.1} parent=23 // pred_region
          %s137 = sand.u32 %s25, 1
          %s138 = scalar_lea.sflag [#allocation3], %s137
          %s139 = sand.u32 %s25, 1
          %s140 = smul.addr %s139, 16
          %s141 = scalar_lea.vmem [#allocation2], %s140
          %s143 = ssub.s32 256, 256
          %144 = vsyncadd %s138, %s143
          %s145 = smul.addr %s15, 2
          %s146 = smul.addr %s145, 128
          %s147 = scalar_lea.hbm %s0, %s146
          %s149 = sshll.u32 %s141, 4
          %s150 = int_to_ptr.vmem [resolvable:$true] %s149
          %152 = dma.hbm_to_vmem [thread:$0]  %s147, 256, %s150, %s138
        $region28: #{tpu_custom_call.1} parent=23 // pred_fallthru
          _
      $region24: #{tpu_custom_call.1} parent=5 // pred_fallthru
        _
      %p153 = scmp.le.s32.totalorder 1, %s15
      %p154 = scmp.lt.s32.totalorder %s15, 3
      %p155 = pnand %p153, %p154
      %p156 = pneg %p155
      // Predicated region
      $region29: #{tpu_custom_call.1} parent=5 // pred_check
        _
      $region30: #{tpu_custom_call.1} parent=5 // pred_check_branch
        %158 = sbr.rel (%p155) target = $region32
      $region31: #{tpu_custom_call.1} parent=5 // pred_region
        %s159 = ssub.s32 %s15, 1
        %s160 = sand.u32 %s28, 1
        %s161 = scalar_lea.sflag [#allocation3], %s160
        %s162 = sand.u32 %s28, 1
        %s163 = smul.addr %s162, 16
        %s164 = scalar_lea.vmem [#allocation2], %s163
        // Predicated region
        $region33: #{tpu_custom_call.1} parent=31 // pred_check
          %p165 = pneg %p41
        $region34: #{tpu_custom_call.1} parent=31 // pred_check_branch
          %167 = sbr.rel (%p165) target = $region36
        $region35: #{tpu_custom_call.1} parent=31 // pred_region
          %168 = dma.done %s161, 256
        $region36: #{tpu_custom_call.1} parent=31 // pred_fallthru
          _
        %s169 = sand.u32 %s28, 1
        %s170 = scalar_lea.sflag [#allocation3], %s169
        %s171 = sand.u32 %s28, 1
        %s172 = smul.addr %s171, 16
        %s173 = scalar_lea.vmem [#allocation2], %s172
        %p174 = pneg %p41
        %p175 = pneg %p38
        %p176 = pneg %p62
        %p177 = pneg %p59
        %p178 = pneg %p83
        %p179 = pneg %p80
        %p180 = pneg %p109
        %p181 = pneg %p106
        %s182 = sand.u32 %s96, 1
        %s183 = scalar_lea.sflag [#allocation4], %s182
        %s184 = sand.u32 %s96, 1
        %s185 = smul.addr %s184, 16
        %s186 = scalar_lea.vmem [#allocation5], %s185
        %v188 = vld [vmem:[%s1] sm:$0xf]
        %v189 = vlaneseq
        %v190 = vand.u32 %v189, 127
        %v191 = vadd.s32 %v190, 128
        %v192 = vand.u32 %v190, 15
        %v193 = vand.u32 %v191, 15
        %v194 = vshra.s32 %v190, 4
        %v195 = vshra.s32 %v191, 4
        %vm196 = vcmp.ne.s32.totalorder %v194, 0
        %vm197 = vcmp.ne.s32.totalorder %v195, 0
        %vm198 = vcmp.ne.s32.totalorder %v194, 15
        %vm199 = vcmp.ne.s32.totalorder %v195, 15
        %vm200 = vcmp.ne.s32.totalorder %v192, 0
        %vm201 = vcmp.ne.s32.totalorder %v193, 0
        %vm202 = vcmp.ne.s32.totalorder %v192, 15
        %vm203 = vcmp.ne.s32.totalorder %v193, 15
        %vm204 = vmand %vm196, %vm200
        %vm205 = vmand %vm197, %vm201
        %vm206 = vmand %vm196, %vm202
        %vm207 = vmand %vm197, %vm203
        %vm208 = vmand %vm198, %vm200
        %vm209 = vmand %vm199, %vm201
        %vm210 = vmand %vm198, %vm202
        %vm211 = vmand %vm199, %vm203
        %v212 = vld [vmem:[%s164] sm:$0xff]
        %v213 = vld [vmem:[%s164 + $0x8] sm:$0xff]
        %214 = vrot.lane.b32.xlu0 %v212, 17
        %v215 = vpop.permute.xlu0 %214
        %216 = vrot.lane.b32.xlu0 %v213, 17
        %v217 = vpop.permute.xlu0 %216
        %vm218 = vcmp.lt.s32.totalorder %v190, 17
        %v219 = vsel %vm218, %v215, %v217
        %v220 = vsel %vm218, %v217, %v215
        %v221 = vsel %vm204, %v220, 0.0
        %v222 = vsel %vm205, %v219, 0.0
        %223 = vrot.lane.b32.xlu0 %v212, 16
        %v224 = vpop.permute.xlu0 %223
        %225 = vrot.lane.b32.xlu0 %v213, 16
        %v226 = vpop.permute.xlu0 %225
        %vm227 = vcmp.lt.s32.totalorder %v190, 16
        %v228 = vsel %vm227, %v224, %v226
        %v229 = vsel %vm227, %v226, %v224
        %v230 = vsel %vm196, %v229, 0.0
        %v231 = vsel %vm197, %v228, 0.0
        %232 = vrot.lane.b32.xlu0 %v212, 15
        %v233 = vpop.permute.xlu0 %232
        %234 = vrot.lane.b32.xlu0 %v213, 15
        %v235 = vpop.permute.xlu0 %234
        %vm236 = vcmp.lt.s32.totalorder %v190, 15
        %v237 = vsel %vm236, %v233, %v235
        %v238 = vsel %vm236, %v235, %v233
        %v239 = vsel %vm206, %v238, 0.0
        %v240 = vsel %vm207, %v237, 0.0
        %241 = vrot.lane.b32.xlu0 %v212, 1
        %v242 = vpop.permute.xlu0 %241
        %243 = vrot.lane.b32.xlu0 %v213, 1
        %v244 = vpop.permute.xlu0 %243
        %vm245 = vcmp.lt.s32.totalorder %v190, 1
        %v246 = vsel %vm245, %v242, %v244
        %v247 = vsel %vm245, %v244, %v242
        %v248 = vsel %vm200, %v247, 0.0
        %v249 = vsel %vm201, %v246, 0.0
        %250 = vrot.lane.b32.xlu0 %v212, 127
        %v251 = vpop.permute.xlu0 %250
        %252 = vrot.lane.b32.xlu0 %v213, 127
        %v253 = vpop.permute.xlu0 %252
        %vm254 = vcmp.lt.s32.totalorder %v190, 127
        %v255 = vsel %vm254, %v251, %v253
        %v256 = vsel %vm254, %v253, %v251
        %v257 = vsel %vm202, %v255, 0.0
        %v258 = vsel %vm203, %v256, 0.0
        %259 = vrot.lane.b32.xlu0 %v212, 113
        %v260 = vpop.permute.xlu0 %259
        %261 = vrot.lane.b32.xlu0 %v213, 113
        %v262 = vpop.permute.xlu0 %261
        %vm263 = vcmp.lt.s32.totalorder %v190, 113
        %v264 = vsel %vm263, %v260, %v262
        %v265 = vsel %vm263, %v262, %v260
        %v266 = vsel %vm208, %v264, 0.0
        %v267 = vsel %vm209, %v265, 0.0
        %268 = vrot.lane.b32.xlu0 %v212, 112
        %v269 = vpop.permute.xlu0 %268
        %270 = vrot.lane.b32.xlu0 %v213, 112
        %v271 = vpop.permute.xlu0 %270
        %vm272 = vcmp.lt.s32.totalorder %v190, 112
        %v273 = vsel %vm272, %v269, %v271
        %v274 = vsel %vm272, %v271, %v269
        %v275 = vsel %vm198, %v273, 0.0
        %v276 = vsel %vm199, %v274, 0.0
        %277 = vrot.lane.b32.xlu0 %v212, 111
        %v278 = vpop.permute.xlu0 %277
        %279 = vrot.lane.b32.xlu0 %v213, 111
        %v280 = vpop.permute.xlu0 %279
        %vm281 = vcmp.lt.s32.totalorder %v190, 111
        %v282 = vsel %vm281, %v278, %v280
        %v283 = vsel %vm281, %v280, %v278
        %v284 = vsel %vm210, %v282, 0.0
        %v285 = vsel %vm211, %v283, 0.0
        %v286 = vpack.c.bf16 %v230, %v221
        %v287 = vpack.c.bf16 %v231, %v222
        %v288 = vpack.c.bf16 %v248, %v239
        %v289 = vpack.c.bf16 %v249, %v240
        %v290 = vpack.c.bf16 %v257, %v212
        %v291 = vpack.c.bf16 %v258, %v213
        %v292 = vpack.c.bf16 %v275, %v266
        %v293 = vpack.c.bf16 %v276, %v267
        %v294 = vpack.c.bf16 %v284, %v284
        %v295 = vpack.c.bf16 %v285, %v285
        %v296 = vld [vmem:[%s2] sm:$0xff]
        %298 = vset.pattern.permute.xlu0 0
        %299 = vperm.xlu0 %298, %v296
        %v300 = vpop.permute.xlu0 %299
        %vm302 = vcmask 588800
        %v304 = vsel %vm302, %v188, 0
        %vm306 = vcmask 1043456
        %v308 = vsel %vm306, %v294, 0
        %v311 = vsel %vm306, %v295, 0
        %313 = vmatprep.subr.bf16.mxu0 0
        %314 = vmatpush1.bf16.msra.mxu0 0
        %315 = vmatprep.subr.bf16.mxu0 0
        %316 = vmatpush1.bf16.msra.mxu0 0
        %317 = vmatprep.subr.bf16.mxu0 0
        %318 = vmatpush1.bf16.msra.mxu0 0
        %319 = vmatprep.subr.bf16.mxu0 %v311
        %320 = vmatpush1.bf16.msra.mxu0 %v308
        %321 = vmatprep.subr.bf16.mxu0 %v293
        %322 = vmatpush1.bf16.msra.mxu0 %v292
        %323 = vmatprep.subr.bf16.mxu0 %v291
        %324 = vmatpush1.bf16.msra.mxu0 %v290
        %325 = vmatprep.subr.bf16.mxu0 %v289
        %326 = vmatpush1.bf16.msra.mxu0 %v288
        %327 = vmatprep.subr.bf16.mxu0 %v287
        %328 = vmatpush1.bf16.msra.mxu0 %v286
        %329 = vmatprep.subr.bf16.mxu0 0
        %330 = vmatpush2.bf16.msra.mxu0 0
        %331 = vmatprep.subr.bf16.mxu0 0
        %332 = vmatpush2.bf16.msra.mxu0 0
        %333 = vmatprep.subr.bf16.mxu0 0
        %334 = vmatpush2.bf16.msra.mxu0 0
        %335 = vmatprep.subr.bf16.mxu0 0
        %336 = vmatpush2.bf16.msra.mxu0 0
        %337 = vmatprep.subr.bf16.mxu0 0
        %338 = vmatpush2.bf16.msra.mxu0 0
        %339 = vmatprep.subr.bf16.mxu0 0
        %340 = vmatpush2.bf16.msra.mxu0 0
        %341 = vmatprep.subr.bf16.mxu0 0
        %342 = vmatpush2.bf16.msra.mxu0 0
        %343 = vmatprep.subr.bf16.mxu0 0
        %344 = vmatpush2.bf16.msra.mxu0 0
        %345 = vmatprep.mubr.bf16.mxu0 0
        %346 = vmatmul.mubr.bf16.gmra.mxu0 %v304
        %v347 = vpop.f32.mrf.mxu0
        %v348 = vadd.f32 %v300, %v347
        %v349 = vpop.f32.mrf.mxu0
        %v350 = vadd.f32 %v300, %v349
        %v351 = vpop.f32.mrf.mxu0
        %v352 = vpop.f32.mrf.mxu0
        %353 = vdwg.mxu0
        %v354 = vmax.f32 %v348, 0.0
        %v355 = vmax.f32 %v350, 0.0
        %356 = vst [vmem:[%s186] sm:$0xff] %v354
        %357 = vst [vmem:[%s186 + $0x8] sm:$0xff] %v355
        %s358 = sand.u32 %s96, 1
        %s359 = scalar_lea.sflag [#allocation4], %s358
        %s360 = sand.u32 %s96, 1
        %s361 = smul.addr %s360, 16
        %s362 = scalar_lea.vmem [#allocation5], %s361
        // Predicated region
        $region37: #{tpu_custom_call.1} parent=31 // pred_check
          %p363 = pneg %p106
        $region38: #{tpu_custom_call.1} parent=31 // pred_check_branch
          %365 = sbr.rel (%p363) target = $region40
        $region39: #{tpu_custom_call.1} parent=31 // pred_region
          %s367 = ssub.s32 256, 256
          %368 = vsyncadd %s359, %s367
          %s369 = smul.addr %s20, 2
          %s370 = smul.addr %s369, 128
          %s371 = scalar_lea.hbm %s3, %s370
          %s373 = sshll.u32 %s362, 4
          %s374 = int_to_ptr.vmem [resolvable:$true] %s373
          %376 = dma.vmem_to_hbm [thread:$0]  %s374, 256, %s371, %s359
        $region40: #{tpu_custom_call.1} parent=31 // pred_fallthru
          _
      $region32: #{tpu_custom_call.1} parent=5 // pred_fallthru
        _
      %p377 = scmp.le.s32.totalorder 2, %s15
      // Predicated region
      $region41: #{tpu_custom_call.1} parent=5 // pred_check
        %p378 = pneg %p377
      $region42: #{tpu_custom_call.1} parent=5 // pred_check_branch
        %380 = sbr.rel (%p378) target = $region44
      $region43: #{tpu_custom_call.1} parent=5 // pred_region
        %s381 = ssub.s32 %s15, 2
        // Predicated region
        $region45: #{tpu_custom_call.1} parent=43 // pred_check
          %p382 = pneg %p112
        $region46: #{tpu_custom_call.1} parent=43 // pred_check_branch
          %384 = sbr.rel (%p382) target = $region48
        $region47: #{tpu_custom_call.1} parent=43 // pred_region
          %s385 = sand.u32 %s97, 1
          %s386 = scalar_lea.sflag [#allocation4], %s385
          %s387 = sand.u32 %s97, 1
          %s388 = smul.addr %s387, 16
          %s389 = scalar_lea.vmem [#allocation5], %s388
          %390 = dma.done %s386, 256
        $region48: #{tpu_custom_call.1} parent=43 // pred_fallthru
          _
      $region44: #{tpu_custom_call.1} parent=5 // pred_fallthru
        _
    $region6: #{tpu_custom_call.1} parent=1 // loop_footer
      %s19 = sadd.s32 1, %s15
    $region7: #{tpu_custom_call.1} parent=1 // loop_footer_branch
      %14 = sbr.rel target = $region3
    $region8: #{tpu_custom_call.1} parent=1 // loop_exit
      _
    %391 = vsyncpa [#allocation3], 1
    %s392 = scalar_lea.sflag [#allocation3], 1
    %393 = vsyncpa %s392, 1
    %394 = vsyncpa [#allocation4], 1
    %s395 = scalar_lea.sflag [#allocation4], 1
    %396 = vsyncpa %s395, 1

</llo_original>
